<compile_context>
chip_gen: v7x
topology: tpu7x:2x2x1
jax: 0.10.0
libtpu: 0.0.40
codegen_flags: <defaults>
</compile_context>

<pallas_src>
import math
import functools

import jax
import jax.numpy as jnp
from jax.experimental import pallas as pl
from jax.experimental.pallas import tpu as pltpu


def _round_up(n, m):
    return ((n + m - 1) // m) * m


def _attn_kernel(x_ref, pe_ref, wqkv_ref, bqkv_ref, wo_ref, bo_ref, o_ref,
                 *, scale, bb, t, dp):
    # x_ref : (Bb, T, Cp)      pe_ref : (T, Cp)
    # wqkv  : (Cp, 3*Dp) bf16  bqkv   : (1, 3*Dp) f32
    # wo    : (Dp, Cp)  bf16   bo     : (1, Cp)   f32
    cp = x_ref.shape[-1]
    rows = bb * t

    # positional encoding + residual base, in f32
    xp3 = x_ref[...].astype(jnp.float32) + pe_ref[...][None]          # (Bb, T, Cp)
    xp = xp3.reshape(rows, cp)                                        # (rows, Cp)
    xp_bf = xp.astype(jnp.bfloat16)

    # fused Q|K|V projection: one MXU push, N = 3*Dp lanes
    qkv = jnp.dot(xp_bf, wqkv_ref[...],
                  preferred_element_type=jnp.float32) + bqkv_ref[...]  # (rows, 3Dp)
    q = qkv[:, :dp]
    k = qkv[:, dp:2 * dp]
    v = qkv[:, 2 * dp:]

    # L2 normalize (torch.nn.functional.normalize, dim=-1, eps=1e-12) via EUP
    # rsqrt: u / max(||u||, 1e-12) == u * rsqrt(max(||u||^2, 1e-24)).
    def _l2n(u):
        ss = jnp.sum(u * u, axis=-1, keepdims=True)
        return u * jax.lax.rsqrt(jnp.maximum(ss, 1e-24))

    # fold the attention scale into q (rows*Dp mults vs Bb*T*T on scores)
    q = _l2n(q) * scale
    k = _l2n(k)
    v = _l2n(v)

    qb = q.reshape(bb, t, dp).astype(jnp.bfloat16)
    kb = k.reshape(bb, t, dp).astype(jnp.bfloat16)
    vb = v.reshape(bb, t, dp).astype(jnp.bfloat16)

    # attention scores (per batch element inside the block)
    scores = jnp.einsum("bqd,bkd->bqk", qb, kb,
                        preferred_element_type=jnp.float32)           # (Bb, T, T)

    # q, k are L2-normalized => |scores| <= scale (= D^-0.5 <= 0.125), so the
    # max-subtraction is unnecessary; denominator via approx EUP reciprocal.
    e = jnp.exp(scores)
    probs = e * pl.reciprocal(jnp.sum(e, axis=-1, keepdims=True), approx=True)

    ctx = jnp.einsum("bqk,bkd->bqd", probs.astype(jnp.bfloat16), vb,
                     preferred_element_type=jnp.float32)              # (Bb, T, Dp)
    ctx2 = ctx.reshape(rows, dp).astype(jnp.bfloat16)

    y = jnp.dot(ctx2, wo_ref[...],
                preferred_element_type=jnp.float32) + bo_ref[...]     # (rows, Cp)
    out = (y + xp).reshape(bb, t, cp)
    o_ref[...] = out.astype(o_ref.dtype)


def temporal_attention(x, pe, params, token_dim, *, target_rows=256):
    """x: (B, T, C) float32; pe: (T, C) float32; params: dict of f32 weights."""
    B, T, C = x.shape
    D = token_dim
    scale = D ** (-0.5)

    # pad channel dims to full 128-lane multiples (zero padding is exact here)
    Cp = _round_up(C, 128)
    Dp = _round_up(D, 128)

    def pad_to(a, shape):
        return jnp.pad(a, [(0, s - d) for d, s in zip(a.shape, shape)])

    # fused + padded weights; matmul operands in bf16, biases stay f32
    wqkv = jnp.concatenate([pad_to(params["wq"], (Cp, Dp)),
                            pad_to(params["wk"], (Cp, Dp)),
                            pad_to(params["wv"], (Cp, Dp))],
                           axis=1).astype(jnp.bfloat16)               # (Cp, 3Dp)
    bqkv = jnp.concatenate([pad_to(params["bq"], (1, Dp)),
                            pad_to(params["bk"], (1, Dp)),
                            pad_to(params["bv"], (1, Dp))], axis=1)   # (1, 3Dp)
    wo = pad_to(params["wo"], (Dp, Cp)).astype(jnp.bfloat16)          # (Dp, Cp)
    bo = pad_to(params["bo"], (1, Cp))                                # (1, Cp)
    pe_p = pad_to(pe, (T, Cp))                                        # (T, Cp)

    # batch-block size: amortize per-step overhead, fill MXU M dim
    Bb = min(B, max(1, target_rows // T))
    B_pad = _round_up(B, Bb)
    x_p = pad_to(x, (B_pad, T, Cp))
    grid = (B_pad // Bb,)

    kernel = functools.partial(_attn_kernel, scale=scale, bb=Bb, t=T, dp=Dp)
    inv = lambda shape: pl.BlockSpec(shape, lambda b: (0, 0))  # grid-invariant
    # TODO(synk): for large production C/D, set pipeline_mode=pl.Buffered(1) on
    # the invariant weight specs (or raise vmem_limit_bytes) to fit v7x's 64 MiB.

    out = pl.pallas_call(
        kernel,
        out_shape=jax.ShapeDtypeStruct((B_pad, T, Cp), x.dtype),
        grid_spec=pltpu.PrefetchScalarGridSpec(
            num_scalar_prefetch=0,
            grid=grid,
            in_specs=[
                pl.BlockSpec((Bb, T, Cp), lambda b: (b, 0, 0)),   # x
                inv((T, Cp)),                                     # pe
                inv((Cp, 3 * Dp)), inv((1, 3 * Dp)),              # fused Wqkv, bqkv
                inv((Dp, Cp)), inv((1, Cp)),                      # Wo, bo
            ],
            out_specs=pl.BlockSpec((Bb, T, Cp), lambda b: (b, 0, 0)),
        ),
        compiler_params=pltpu.CompilerParams(
            dimension_semantics=("parallel",)),
    )(x_p, pe_p, wqkv, bqkv, wo, bo)

    return out[:B, :, :C]


def make_positional_encoding(frame_count, in_dims):
    position = jnp.arange(frame_count, dtype=jnp.float32)[:, None]       # (T, 1)
    div_term = jnp.exp(jnp.arange(0, in_dims, 2, dtype=jnp.float32)
                       * (-math.log(10000.0) / in_dims))                 # (C/2,)
    pe = jnp.zeros((frame_count, in_dims), dtype=jnp.float32)
    pe = pe.at[:, 0::2].set(jnp.sin(position * div_term))
    pe = pe.at[:, 1::2].set(jnp.cos(position * div_term))
    return pe


def init_params(key, in_channels, token_dim):
    # nn.Linear-style init: uniform(-1/sqrt(fan_in), 1/sqrt(fan_in)).
    ks = jax.random.split(key, 8)

    def lin(kw, kb, fan_in, fan_out):
        bound = 1.0 / math.sqrt(fan_in)
        w = jax.random.uniform(kw, (fan_in, fan_out), jnp.float32, -bound, bound)
        b = jax.random.uniform(kb, (1, fan_out), jnp.float32, -bound, bound)
        return w, b

    wq, bq = lin(ks[0], ks[1], in_channels, token_dim)
    wk, bk = lin(ks[2], ks[3], in_channels, token_dim)
    wv, bv = lin(ks[4], ks[5], in_channels, token_dim)
    wo, bo = lin(ks[6], ks[7], token_dim, in_channels)
    return dict(wq=wq, bq=bq, wk=wk, bk=bk, wv=wv, bv=bv, wo=wo, bo=bo)


def _l2_normalize_ref(v, eps=1e-12):
    norm = jnp.sqrt(jnp.sum(v * v, axis=-1, keepdims=True))
    return v / jnp.maximum(norm, eps)


def reference(x, pe, params, token_dim):
    # Plain-JAX f32 reference of the same forward pass.
    xp = x + pe[None]
    q = _l2_normalize_ref(xp @ params["wq"] + params["bq"])
    k = _l2_normalize_ref(xp @ params["wk"] + params["bk"])
    v = _l2_normalize_ref(xp @ params["wv"] + params["bv"])
    scores = jnp.einsum("btd,bsd->bts", q, k) * (token_dim ** -0.5)
    probs = jax.nn.softmax(scores, axis=-1)
    ctx = jnp.einsum("bts,bsd->btd", probs, v)
    return ctx @ params["wo"] + params["bo"] + xp


if __name__ == "__main__":
    # small but module-consistent shapes
    B = 2            # batch
    T = 8            # frame_count
    C = 32           # in_channels
    D = 64           # token_dim

    key = jax.random.PRNGKey(0)
    kx, kp = jax.random.split(key)
    x = jax.random.normal(kx, (B, T, C), dtype=jnp.float32)
    params = init_params(kp, C, D)
    pe = make_positional_encoding(T, C)

    # NOTE: dropout (p=0.1) is identity in eval mode; not applied here.
    out = temporal_attention(x, pe, params, D)
    out = jax.block_until_ready(out)

    ref = reference(x, pe, params, D)
    assert out.shape == (B, T, C)
    # bf16 MXU inputs (f32 accumulation) => loosened tolerance vs f32 reference.
    assert jnp.max(jnp.abs(out - ref)) < 5e-2

    print("KERNEL_OK")
</pallas_src>

<mosaic_0001>
module attributes {stable_mosaic.version = 11 : i64} {
  func.func @_attn_kernel(%arg0: i32, %arg1: memref<2x8x128xf32, #tpu.memory_space<vmem>>, %arg2: memref<8x128xf32, #tpu.memory_space<vmem>>, %arg3: memref<128x384xbf16, #tpu.memory_space<vmem>>, %arg4: memref<1x384xf32, #tpu.memory_space<vmem>>, %arg5: memref<128x128xbf16, #tpu.memory_space<vmem>>, %arg6: memref<1x128xf32, #tpu.memory_space<vmem>>, %arg7: memref<2x8x128xf32, #tpu.memory_space<vmem>>) attributes {dimension_semantics = [#tpu.dimension_semantics<parallel>], iteration_bounds = array<i64: 1>, scalar_prefetch = 0 : i64, scratch_operands = 0 : i64, tpu.core_type = #tpu.core_type<tc>, window_params = [{transform_indices = @transform_0, window_bounds = array<i64: 2, 8, 128>}, {pipeline_mode = #tpu.pipeline_mode<synchronous>, transform_indices = @transform_1, window_bounds = array<i64: 8, 128>}, {pipeline_mode = #tpu.pipeline_mode<synchronous>, transform_indices = @transform_2, window_bounds = array<i64: 128, 384>}, {pipeline_mode = #tpu.pipeline_mode<synchronous>, transform_indices = @transform_3, window_bounds = array<i64: 1, 384>}, {pipeline_mode = #tpu.pipeline_mode<synchronous>, transform_indices = @transform_4, window_bounds = array<i64: 128, 128>}, {pipeline_mode = #tpu.pipeline_mode<synchronous>, transform_indices = @transform_5, window_bounds = array<i64: 1, 128>}, {transform_indices = @transform_6, window_bounds = array<i64: 2, 8, 128>}]} {
    %c0 = arith.constant 0 : index
    %c0_0 = arith.constant 0 : index
    %c0_1 = arith.constant 0 : index
    %0 = vector.load %arg1[%c0, %c0_0, %c0_1] : memref<2x8x128xf32, #tpu.memory_space<vmem>>, vector<2x8x128xf32>
    %c0_2 = arith.constant 0 : index
    %c0_3 = arith.constant 0 : index
    %1 = vector.load %arg2[%c0_2, %c0_3] : memref<8x128xf32, #tpu.memory_space<vmem>>, vector<8x128xf32>
    %2 = vector.shape_cast %1 : vector<8x128xf32> to vector<1x8x128xf32>
    %3 = vector.broadcast %2 : vector<1x8x128xf32> to vector<2x8x128xf32>
    %4 = arith.addf %0, %3 : vector<2x8x128xf32>
    %5 = vector.shape_cast %4 : vector<2x8x128xf32> to vector<16x128xf32>
    %6 = arith.truncf %5 : vector<16x128xf32> to vector<16x128xbf16>
    %c0_4 = arith.constant 0 : index
    %c0_5 = arith.constant 0 : index
    %7 = vector.load %arg3[%c0_4, %c0_5] : memref<128x384xbf16, #tpu.memory_space<vmem>>, vector<128x384xbf16>
    %cst = arith.constant dense<0.000000e+00> : vector<16x384xf32>
    %8 = tpu.matmul %6, %7, %cst {dimension_numbers = #tpu.dot_dimension_numbers<[1], [0], [0], [1], [0, 0, 1, 1], [], []>} : vector<16x128xbf16>, vector<128x384xbf16>, vector<16x384xf32> -> vector<16x384xf32>
    %c0_6 = arith.constant 0 : index
    %c0_7 = arith.constant 0 : index
    %9 = vector.load %arg4[%c0_6, %c0_7] : memref<1x384xf32, #tpu.memory_space<vmem>>, vector<1x384xf32>
    %10 = vector.broadcast %9 : vector<1x384xf32> to vector<16x384xf32>
    %11 = arith.addf %8, %10 : vector<16x384xf32>
    %12 = vector.extract_strided_slice %11 {offsets = [0, 0], sizes = [16, 128], strides = [1, 1]} : vector<16x384xf32> to vector<16x128xf32>
    %13 = vector.extract_strided_slice %11 {offsets = [0, 128], sizes = [16, 128], strides = [1, 1]} : vector<16x384xf32> to vector<16x128xf32>
    %14 = vector.extract_strided_slice %11 {offsets = [0, 256], sizes = [16, 128], strides = [1, 1]} : vector<16x384xf32> to vector<16x128xf32>
    %15 = arith.mulf %12, %12 : vector<16x128xf32>
    %cst_8 = arith.constant dense<0.000000e+00> : vector<16xf32>
    %16 = vector.multi_reduction <add>, %15, %cst_8 [1] : vector<16x128xf32> to vector<16xf32>
    %17 = vector.shape_cast %16 : vector<16xf32> to vector<16x1xf32>
    %cst_9 = arith.constant 1.000000e-24 : f32
    %18 = vector.broadcast %cst_9 : f32 to vector<16x1xf32>
    %19 = arith.maximumf %17, %18 : vector<16x1xf32>
    %20 = math.rsqrt %19 : vector<16x1xf32>
    %21 = vector.broadcast %20 : vector<16x1xf32> to vector<16x128xf32>
    %22 = arith.mulf %12, %21 : vector<16x128xf32>
    %cst_10 = arith.constant 1.250000e-01 : f32
    %23 = vector.broadcast %cst_10 : f32 to vector<16x128xf32>
    %24 = arith.mulf %22, %23 : vector<16x128xf32>
    %25 = arith.mulf %13, %13 : vector<16x128xf32>
    %cst_11 = arith.constant dense<0.000000e+00> : vector<16xf32>
    %26 = vector.multi_reduction <add>, %25, %cst_11 [1] : vector<16x128xf32> to vector<16xf32>
    %27 = vector.shape_cast %26 : vector<16xf32> to vector<16x1xf32>
    %cst_12 = arith.constant 1.000000e-24 : f32
    %28 = vector.broadcast %cst_12 : f32 to vector<16x1xf32>
    %29 = arith.maximumf %27, %28 : vector<16x1xf32>
    %30 = math.rsqrt %29 : vector<16x1xf32>
    %31 = vector.broadcast %30 : vector<16x1xf32> to vector<16x128xf32>
    %32 = arith.mulf %13, %31 : vector<16x128xf32>
    %33 = arith.mulf %14, %14 : vector<16x128xf32>
    %cst_13 = arith.constant dense<0.000000e+00> : vector<16xf32>
    %34 = vector.multi_reduction <add>, %33, %cst_13 [1] : vector<16x128xf32> to vector<16xf32>
    %35 = vector.shape_cast %34 : vector<16xf32> to vector<16x1xf32>
    %cst_14 = arith.constant 1.000000e-24 : f32
    %36 = vector.broadcast %cst_14 : f32 to vector<16x1xf32>
    %37 = arith.maximumf %35, %36 : vector<16x1xf32>
    %38 = math.rsqrt %37 : vector<16x1xf32>
    %39 = vector.broadcast %38 : vector<16x1xf32> to vector<16x128xf32>
    %40 = arith.mulf %14, %39 : vector<16x128xf32>
    %41 = vector.shape_cast %24 : vector<16x128xf32> to vector<2x8x128xf32>
    %42 = arith.truncf %41 : vector<2x8x128xf32> to vector<2x8x128xbf16>
    %43 = vector.shape_cast %32 : vector<16x128xf32> to vector<2x8x128xf32>
    %44 = arith.truncf %43 : vector<2x8x128xf32> to vector<2x8x128xbf16>
    %45 = vector.shape_cast %40 : vector<16x128xf32> to vector<2x8x128xf32>
    %46 = arith.truncf %45 : vector<2x8x128xf32> to vector<2x8x128xbf16>
    "tpu.trace_start"() <{level = 10 : i32, message = "bqd,bkd->bqk"}> : () -> ()
    %cst_15 = arith.constant dense<0.000000e+00> : vector<2x8x8xf32>
    %47 = tpu.matmul %42, %44, %cst_15 {dimension_numbers = #tpu.dot_dimension_numbers<[2], [2], [1], [1], [0, 0, 0, 1, 1, 1], [0], [0]>} : vector<2x8x128xbf16>, vector<2x8x128xbf16>, vector<2x8x8xf32> -> vector<2x8x8xf32>
    "tpu.trace_stop"() : () -> ()
    %48 = math.exp %47 : vector<2x8x8xf32>
    %cst_16 = arith.constant dense<0.000000e+00> : vector<2x8xf32>
    %49 = vector.multi_reduction <add>, %48, %cst_16 [2] : vector<2x8x8xf32> to vector<2x8xf32>
    %50 = vector.shape_cast %49 : vector<2x8xf32> to vector<2x8x1xf32>
    %51 = tpu.reciprocal %50 {approx = true} : vector<2x8x1xf32> -> vector<2x8x1xf32>
    %52 = vector.broadcast %51 : vector<2x8x1xf32> to vector<2x8x8xf32>
    %53 = arith.mulf %48, %52 : vector<2x8x8xf32>
    %54 = arith.truncf %53 : vector<2x8x8xf32> to vector<2x8x8xbf16>
    "tpu.trace_start"() <{level = 10 : i32, message = "bqk,bkd->bqd"}> : () -> ()
    %cst_17 = arith.constant dense<0.000000e+00> : vector<2x8x128xf32>
    %55 = tpu.matmul %54, %46, %cst_17 {dimension_numbers = #tpu.dot_dimension_numbers<[2], [1], [1], [2], [0, 0, 0, 1, 1, 2], [0], [0]>} : vector<2x8x8xbf16>, vector<2x8x128xbf16>, vector<2x8x128xf32> -> vector<2x8x128xf32>
    "tpu.trace_stop"() : () -> ()
    %56 = vector.shape_cast %55 : vector<2x8x128xf32> to vector<16x128xf32>
    %57 = arith.truncf %56 : vector<16x128xf32> to vector<16x128xbf16>
    %c0_18 = arith.constant 0 : index
    %c0_19 = arith.constant 0 : index
    %58 = vector.load %arg5[%c0_18, %c0_19] : memref<128x128xbf16, #tpu.memory_space<vmem>>, vector<128x128xbf16>
    %cst_20 = arith.constant dense<0.000000e+00> : vector<16x128xf32>
    %59 = tpu.matmul %57, %58, %cst_20 {dimension_numbers = #tpu.dot_dimension_numbers<[1], [0], [0], [1], [0, 0, 1, 1], [], []>} : vector<16x128xbf16>, vector<128x128xbf16>, vector<16x128xf32> -> vector<16x128xf32>
    %c0_21 = arith.constant 0 : index
    %c0_22 = arith.constant 0 : index
    %60 = vector.load %arg6[%c0_21, %c0_22] : memref<1x128xf32, #tpu.memory_space<vmem>>, vector<1x128xf32>
    %61 = vector.broadcast %60 : vector<1x128xf32> to vector<16x128xf32>
    %62 = arith.addf %59, %61 : vector<16x128xf32>
    %63 = arith.addf %62, %5 : vector<16x128xf32>
    %64 = vector.shape_cast %63 : vector<16x128xf32> to vector<2x8x128xf32>
    %c0_23 = arith.constant 0 : index
    %c0_24 = arith.constant 0 : index
    %c0_25 = arith.constant 0 : index
    %65 = vector.load %arg7[%c0_23, %c0_24, %c0_25] : memref<2x8x128xf32, #tpu.memory_space<vmem>>, vector<2x8x128xf32>
    tpu.vector_store %arg7[%c0_23, %c0_24, %c0_25], %64 {strides = array<i32>} : memref<2x8x128xf32, #tpu.memory_space<vmem>>, vector<2x8x128xf32>,
    return
  }
  func.func @transform_0(%arg0: i32) -> (i32, i32, i32) {
    %c0_i32 = arith.constant 0 : i32
    %c0_i32_0 = arith.constant 0 : i32
    %c0_i32_1 = arith.constant 0 : i32
    return %arg0, %c0_i32, %c0_i32_0 : i32, i32, i32
  }
  func.func @transform_1(%arg0: i32) -> (i32, i32) {
    %c0_i32 = arith.constant 0 : i32
    %c0_i32_0 = arith.constant 0 : i32
    %c0_i32_1 = arith.constant 0 : i32
    return %c0_i32, %c0_i32_0 : i32, i32
  }
  func.func @transform_2(%arg0: i32) -> (i32, i32) {
    %c0_i32 = arith.constant 0 : i32
    %c0_i32_0 = arith.constant 0 : i32
    %c0_i32_1 = arith.constant 0 : i32
    return %c0_i32, %c0_i32_0 : i32, i32
  }
  func.func @transform_3(%arg0: i32) -> (i32, i32) {
    %c0_i32 = arith.constant 0 : i32
    %c0_i32_0 = arith.constant 0 : i32
    %c0_i32_1 = arith.constant 0 : i32
    return %c0_i32, %c0_i32_0 : i32, i32
  }
  func.func @transform_4(%arg0: i32) -> (i32, i32) {
    %c0_i32 = arith.constant 0 : i32
    %c0_i32_0 = arith.constant 0 : i32
    %c0_i32_1 = arith.constant 0 : i32
    return %c0_i32, %c0_i32_0 : i32, i32
  }
  func.func @transform_5(%arg0: i32) -> (i32, i32) {
    %c0_i32 = arith.constant 0 : i32
    %c0_i32_0 = arith.constant 0 : i32
    %c0_i32_1 = arith.constant 0 : i32
    return %c0_i32, %c0_i32_0 : i32, i32
  }
  func.func @transform_6(%arg0: i32) -> (i32, i32, i32) {
    %c0_i32 = arith.constant 0 : i32
    %c0_i32_0 = arith.constant 0 : i32
    %c0_i32_1 = arith.constant 0 : i32
    return %arg0, %c0_i32, %c0_i32_0 : i32, i32, i32
  }
}

</mosaic_0001>

<llo_original>
// kernel: tpu_custom_call.1
$region0: #{tpu_custom_call.1}
  #allocation0 [shape = 'u32[]', space=smem, size = 0x4, offset = 0x4, fixed_abs, tag = 'smem constant byte address 0x4 - core index']
  #allocation1 [shape = 'u32[144,128]{1,0:T(1,128)}', space=vmem, size = 0x12000, scoped, tag = 'internal scratch']
  %s0 = inlined_call_operand.hbm [shape: f32[2,8,128], index: 0, kind: input, shape index: {}]
  %s1 = inlined_call_operand.hbm [shape: f32[8,128], index: 1, kind: input, shape index: {}]
  %s2 = inlined_call_operand.hbm [shape: bf16[128,384], index: 2, kind: input, shape index: {}]
  %s3 = inlined_call_operand.vmem [shape: f32[1,384], index: 3, kind: input, shape index: {}]
  %s4 = inlined_call_operand.hbm [shape: bf16[128,128], index: 4, kind: input, shape index: {}]
  %s5 = inlined_call_operand.vmem [shape: f32[1,128], index: 5, kind: input, shape index: {}]
  %s6 = inlined_call_operand.hbm [shape: f32[2,8,128], index: 6, kind: output, shape index: {}]
  %s7 = sld [smem:[#allocation0]]
  $region50: #{tpu_custom_call.1} parent=0
    _
  %s9 = ssub.s32 1, %s7
  %s10 = scalar_select 0, %s9, %s7
  $region1: #{tpu_custom_call.1} parent=0
    #allocation2 [shape = 'u8[8192]{0}', space=vmem, size = 0x2000, scoped, tag = 'input window, operand 0, single buffered']
    #allocation3 [shape = 's32[1]{0}', space=sflag, size = 0x4, scoped, tag = 'scoped memory for tpu_custom_call.1']
    #allocation4 [shape = 's32[1]{0}', space=sflag, size = 0x4, scoped, tag = 'scoped memory for tpu_custom_call.1']
    #allocation5 [shape = 'u8[4096]{0}', space=vmem, size = 0x1000, scoped, tag = 'input window, operand 1, single buffered']
    #allocation6 [shape = 's32[1]{0}', space=sflag, size = 0x4, scoped, tag = 'scoped memory for tpu_custom_call.1']
    #allocation7 [shape = 'u8[98304]{0}', space=vmem, size = 0x18000, scoped, tag = 'input window, operand 2, single buffered']
    #allocation8 [shape = 'u8[32768]{0}', space=vmem, size = 0x8000, scoped, tag = 'input window, operand 4, single buffered']
    #allocation9 [shape = 's32[1]{0}', space=sflag, size = 0x4, scoped, tag = 'scoped memory for tpu_custom_call.1']
    #allocation10 [shape = 'u8[8192]{0}', space=vmem, size = 0x2000, scoped, tag = 'output window, operand 0, single buffered']
    %11 = vsyncpa [#allocation3], 0
    %12 = vsyncpa [#allocation6], 0
    %13 = vsyncpa [#allocation9], 0
    %14 = vsyncpa [#allocation4], 0
    // Predicated region
    $region2: #{tpu_custom_call.1} parent=1 // pred_check
      _
    $region3: #{tpu_custom_call.1} parent=1 // pred_check_branch
      %16 = sbr.rel (0) target = $region5
    $region4: #{tpu_custom_call.1} parent=1 // pred_region
      %s18 = ssub.s32 256, 256
      %19 = vsyncadd [#allocation3], %s18
      %s20 = sshll.u32 [#allocation2], 4
      %s21 = int_to_ptr.vmem [resolvable:$true] %s20
      %26 = dma.hbm_to_vmem [thread:$0]  %s0, 256, %s21, [#allocation3], 128, 128, 8
    $region5: #{tpu_custom_call.1} parent=1 // pred_fallthru
      _
    // Predicated region
    $region6: #{tpu_custom_call.1} parent=1 // pred_check
      _
    $region7: #{tpu_custom_call.1} parent=1 // pred_check_branch
      %28 = sbr.rel (0) target = $region9
    $region8: #{tpu_custom_call.1} parent=1 // pred_region
      %s30 = ssub.s32 128, 128
      %31 = vsyncadd [#allocation6], %s30
      %s33 = sshll.u32 [#allocation5], 4
      %s34 = int_to_ptr.vmem [resolvable:$true] %s33
      %36 = dma.hbm_to_vmem [thread:$0]  %s1, 128, %s34, [#allocation6]
    $region9: #{tpu_custom_call.1} parent=1 // pred_fallthru
      _
    // Predicated region
    $region10: #{tpu_custom_call.1} parent=1 // pred_check
      _
    $region11: #{tpu_custom_call.1} parent=1 // pred_check_branch
      %38 = sbr.rel (0) target = $region13
    $region12: #{tpu_custom_call.1} parent=1 // pred_region
      %s40 = ssub.s32 3072, 3072
      %41 = vsyncadd [#allocation6], %s40
      %s42 = sshll.u32 [#allocation7], 4
      %s43 = int_to_ptr.vmem [resolvable:$true] %s42
      %48 = dma.hbm_to_vmem [thread:$0]  %s2, 3072, %s43, [#allocation6], 192, 192, 12
    $region13: #{tpu_custom_call.1} parent=1 // pred_fallthru
      _
    // Predicated region
    $region14: #{tpu_custom_call.1} parent=1 // pred_check
      _
    $region15: #{tpu_custom_call.1} parent=1 // pred_check_branch
      %50 = sbr.rel (0) target = $region17
    $region16: #{tpu_custom_call.1} parent=1 // pred_region
      _
    $region17: #{tpu_custom_call.1} parent=1 // pred_fallthru
      _
    // Predicated region
    $region18: #{tpu_custom_call.1} parent=1 // pred_check
      _
    $region19: #{tpu_custom_call.1} parent=1 // pred_check_branch
      %52 = sbr.rel (0) target = $region21
    $region20: #{tpu_custom_call.1} parent=1 // pred_region
      %s54 = ssub.s32 1024, 1024
      %55 = vsyncadd [#allocation9], %s54
      %s56 = sshll.u32 [#allocation8], 4
      %s57 = int_to_ptr.vmem [resolvable:$true] %s56
      %62 = dma.hbm_to_vmem [thread:$0]  %s4, 1024, %s57, [#allocation9], 64, 64, 4
    $region21: #{tpu_custom_call.1} parent=1 // pred_fallthru
      _
    // Predicated region
    $region22: #{tpu_custom_call.1} parent=1 // pred_check
      _
    $region23: #{tpu_custom_call.1} parent=1 // pred_check_branch
      %64 = sbr.rel (0) target = $region25
    $region24: #{tpu_custom_call.1} parent=1 // pred_region
      _
    $region25: #{tpu_custom_call.1} parent=1 // pred_fallthru
      _
    // Predicated region
    $region26: #{tpu_custom_call.1} parent=1 // pred_check
      _
    $region27: #{tpu_custom_call.1} parent=1 // pred_check_branch
      %66 = sbr.rel (0) target = $region29
    $region28: #{tpu_custom_call.1} parent=1 // pred_region
      %67 = dma.done [#allocation3], 256
    $region29: #{tpu_custom_call.1} parent=1 // pred_fallthru
      _
    // Predicated region
    $region30: #{tpu_custom_call.1} parent=1 // pred_check
      _
    $region31: #{tpu_custom_call.1} parent=1 // pred_check_branch
      %69 = sbr.rel (0) target = $region33
    $region32: #{tpu_custom_call.1} parent=1 // pred_region
      %70 = dma.done [#allocation6], 128
    $region33: #{tpu_custom_call.1} parent=1 // pred_fallthru
      _
    // Predicated region
    $region34: #{tpu_custom_call.1} parent=1 // pred_check
      _
    $region35: #{tpu_custom_call.1} parent=1 // pred_check_branch
      %72 = sbr.rel (0) target = $region37
    $region36: #{tpu_custom_call.1} parent=1 // pred_region
      %73 = dma.done [#allocation6], 3072
    $region37: #{tpu_custom_call.1} parent=1 // pred_fallthru
      _
    // Predicated region
    $region38: #{tpu_custom_call.1} parent=1 // pred_check
      _
    $region39: #{tpu_custom_call.1} parent=1 // pred_check_branch
      %75 = sbr.rel (0) target = $region41
    $region40: #{tpu_custom_call.1} parent=1 // pred_region
      %76 = dma.done [#allocation9], 1024
    $region41: #{tpu_custom_call.1} parent=1 // pred_fallthru
      _
    %v78 = vld [vmem:[#allocation2] sm:$0xff]
    %v79 = vld [vmem:[#allocation2 + $0x8] sm:$0xff]
    %v80 = vld [vmem:[#allocation5] sm:$0xff]
    %v81 = vadd.f32 %v78, %v80
    %v82 = vadd.f32 %v79, %v80
    %v83 = vpack.c.bf16 %v82, %v81
    %v84 = vld [vmem:[#allocation7] sm:$0xff]
    %v85 = vld [vmem:[#allocation7 + $0x8] sm:$0xf]
    %v86 = vld [vmem:[#allocation7 + $0xc] sm:$0xff]
    %v87 = vld [vmem:[#allocation7 + $0x14] sm:$0xf]
    %v88 = vld [vmem:[#allocation7 + $0x18] sm:$0xff]
    %v89 = vld [vmem:[#allocation7 + $0x20] sm:$0xf]
    %v90 = vld [vmem:[#allocation7 + $0x24] sm:$0xff]
    %v91 = vld [vmem:[#allocation7 + $0x2c] sm:$0xf]
    %v92 = vld [vmem:[#allocation7 + $0x30] sm:$0xff]
    %v93 = vld [vmem:[#allocation7 + $0x38] sm:$0xf]
    %v94 = vld [vmem:[#allocation7 + $0x3c] sm:$0xff]
    %v95 = vld [vmem:[#allocation7 + $0x44] sm:$0xf]
    %v96 = vld [vmem:[#allocation7 + $0x48] sm:$0xff]
    %v97 = vld [vmem:[#allocation7 + $0x50] sm:$0xf]
    %v98 = vld [vmem:[#allocation7 + $0x54] sm:$0xff]
    %v99 = vld [vmem:[#allocation7 + $0x5c] sm:$0xf]
    %v100 = vld [vmem:[#allocation7 + $0x60] sm:$0xff]
    %v101 = vld [vmem:[#allocation7 + $0x68] sm:$0xf]
    %v102 = vld [vmem:[#allocation7 + $0x6c] sm:$0xff]
    %v103 = vld [vmem:[#allocation7 + $0x74] sm:$0xf]
    %v104 = vld [vmem:[#allocation7 + $0x78] sm:$0xff]
    %v105 = vld [vmem:[#allocation7 + $0x80] sm:$0xf]
    %v106 = vld [vmem:[#allocation7 + $0x84] sm:$0xff]
    %v107 = vld [vmem:[#allocation7 + $0x8c] sm:$0xf]
    %v108 = vld [vmem:[#allocation7 + $0x90] sm:$0xff]
    %v109 = vld [vmem:[#allocation7 + $0x98] sm:$0xf]
    %v110 = vld [vmem:[#allocation7 + $0x9c] sm:$0xff]
    %v111 = vld [vmem:[#allocation7 + $0xa4] sm:$0xf]
    %v112 = vld [vmem:[#allocation7 + $0xa8] sm:$0xff]
    %v113 = vld [vmem:[#allocation7 + $0xb0] sm:$0xf]
    %v114 = vld [vmem:[#allocation7 + $0xb4] sm:$0xff]
    %v115 = vld [vmem:[#allocation7 + $0xbc] sm:$0xf]
    %v116 = vld [vmem:[%s3] sm:$0x7]
    %v118 = vlaneseq
    %v119 = vshrl.u32 %v118, 7
    %v120 = vsub.s32 0, %v119
    %v121 = vrot.slane %v116, %v120
    %v122 = vlaneseq
    %v123 = vshrl.u32 %v122, 7
    %v124 = vsub.s32 1, %v123
    %v125 = vrot.slane %v116, %v124
    %v126 = vlaneseq
    %v127 = vshrl.u32 %v126, 7
    %v128 = vsub.s32 2, %v127
    %v129 = vrot.slane %v116, %v128
    %v165 = vunpack.c.l.b16 %v84
    %v166 = vunpack.c.h.b16 %v84
    %v167 = vunpack.c.l.b16 %v85
    %v168 = vunpack.c.l.b16 %v86
    %v169 = vunpack.c.h.b16 %v86
    %v170 = vunpack.c.l.b16 %v87
    %v171 = vunpack.c.l.b16 %v88
    %v172 = vunpack.c.h.b16 %v88
    %v173 = vunpack.c.l.b16 %v89
    %v174 = vunpack.c.l.b16 %v90
    %v175 = vunpack.c.h.b16 %v90
    %v176 = vunpack.c.l.b16 %v91
    %v177 = vunpack.c.l.b16 %v92
    %v178 = vunpack.c.h.b16 %v92
    %v179 = vunpack.c.l.b16 %v93
    %v180 = vunpack.c.l.b16 %v94
    %v181 = vunpack.c.h.b16 %v94
    %v182 = vunpack.c.l.b16 %v95
    %v183 = vunpack.c.l.b16 %v96
    %v184 = vunpack.c.h.b16 %v96
    %v185 = vunpack.c.l.b16 %v97
    %v186 = vunpack.c.l.b16 %v98
    %v187 = vunpack.c.h.b16 %v98
    %v188 = vunpack.c.l.b16 %v99
    %v189 = vunpack.c.l.b16 %v100
    %v190 = vunpack.c.h.b16 %v100
    %v191 = vunpack.c.l.b16 %v101
    %v192 = vunpack.c.l.b16 %v102
    %v193 = vunpack.c.h.b16 %v102
    %v194 = vunpack.c.l.b16 %v103
    %v195 = vunpack.c.l.b16 %v104
    %v196 = vunpack.c.h.b16 %v104
    %v197 = vunpack.c.l.b16 %v105
    %v198 = vunpack.c.l.b16 %v106
    %v199 = vunpack.c.h.b16 %v106
    %v200 = vunpack.c.l.b16 %v107
    %v201 = vunpack.c.l.b16 %v108
    %v202 = vunpack.c.h.b16 %v108
    %v203 = vunpack.c.l.b16 %v109
    %v204 = vunpack.c.l.b16 %v110
    %v205 = vunpack.c.h.b16 %v110
    %v206 = vunpack.c.l.b16 %v111
    %v207 = vunpack.c.l.b16 %v112
    %v208 = vunpack.c.h.b16 %v112
    %v209 = vunpack.c.l.b16 %v113
    %v210 = vunpack.c.l.b16 %v114
    %v211 = vunpack.c.h.b16 %v114
    %v212 = vunpack.c.l.b16 %v115
    %v213 = vpack.c.b16 %v168, %v165
    %v214 = vpack.c.b16 %v169, %v166
    %v215 = vpack.c.b16 %v170, %v167
    %v216 = vpack.c.b16 %v174, %v171
    %v217 = vpack.c.b16 %v175, %v172
    %v218 = vpack.c.b16 %v176, %v173
    %v219 = vpack.c.b16 %v180, %v177
    %v220 = vpack.c.b16 %v181, %v178
    %v221 = vpack.c.b16 %v182, %v179
    %v222 = vpack.c.b16 %v186, %v183
    %v223 = vpack.c.b16 %v187, %v184
    %v224 = vpack.c.b16 %v188, %v185
    %v225 = vpack.c.b16 %v192, %v189
    %v226 = vpack.c.b16 %v193, %v190
    %v227 = vpack.c.b16 %v194, %v191
    %v228 = vpack.c.b16 %v198, %v195
    %v229 = vpack.c.b16 %v199, %v196
    %v230 = vpack.c.b16 %v200, %v197
    %v231 = vpack.c.b16 %v204, %v201
    %v232 = vpack.c.b16 %v205, %v202
    %v233 = vpack.c.b16 %v206, %v203
    %v234 = vpack.c.b16 %v210, %v207
    %v235 = vpack.c.b16 %v211, %v208
    %v236 = vpack.c.b16 %v212, %v209
    %261 = vmatprep.subr.bf16.mxu0 %v214
    %262 = vmatpush1.bf16.msra.mxu0 %v213
    %263 = vmatprep.subr.bf16.mxu0 %v217
    %264 = vmatpush1.bf16.msra.mxu0 %v216
    %265 = vmatprep.subr.bf16.mxu0 %v220
    %266 = vmatpush1.bf16.msra.mxu0 %v219
    %267 = vmatprep.subr.bf16.mxu0 %v223
    %268 = vmatpush1.bf16.msra.mxu0 %v222
    %269 = vmatprep.subr.bf16.mxu0 %v226
    %270 = vmatpush1.bf16.msra.mxu0 %v225
    %271 = vmatprep.subr.bf16.mxu0 %v229
    %272 = vmatpush1.bf16.msra.mxu0 %v228
    %273 = vmatprep.subr.bf16.mxu0 %v232
    %274 = vmatpush1.bf16.msra.mxu0 %v231
    %275 = vmatprep.subr.bf16.mxu0 %v235
    %276 = vmatpush1.bf16.msra.mxu0 %v234
    %277 = vmatprep.subr.bf16.mxu0 0
    %278 = vmatpush1.bf16.msra.mxu0 0
    %279 = vmatprep.subr.bf16.mxu0 0
    %280 = vmatpush1.bf16.msra.mxu0 0
    %281 = vmatprep.subr.bf16.mxu0 0
    %282 = vmatpush1.bf16.msra.mxu0 0
    %283 = vmatprep.subr.bf16.mxu0 0
    %284 = vmatpush1.bf16.msra.mxu0 0
    %285 = vmatprep.subr.bf16.mxu0 0
    %286 = vmatpush1.bf16.msra.mxu0 0
    %287 = vmatprep.subr.bf16.mxu0 0
    %288 = vmatpush1.bf16.msra.mxu0 0
    %289 = vmatprep.subr.bf16.mxu0 0
    %290 = vmatpush1.bf16.msra.mxu0 0
    %291 = vmatprep.subr.bf16.mxu0 0
    %292 = vmatpush1.bf16.msra.mxu0 0
    %293 = vmatprep.mubr.bf16.mxu0 0
    %294 = vmatmul.mubr.bf16.gmra.mrb[0].mxu0 %v83
    %v295 = vpop.f32.mrb[0].mxu0
    %v296 = vadd.f32 %v121, %v295
    %v297 = vpop.f32.mrb[0].mxu0
    %v298 = vadd.f32 %v125, %v297
    %v299 = vpop.f32.mrb[0].mxu0
    %v300 = vadd.f32 %v121, %v299
    %v301 = vpop.f32.mrb[0].mxu0
    %v302 = vadd.f32 %v125, %v301
    %303 = vdwg.mxu0
    %304 = vmatprep.subr.bf16.mxu0 0
    %305 = vmatpush1.bf16.msra.mxu0 %v215
    %306 = vmatprep.subr.bf16.mxu0 0
    %307 = vmatpush1.bf16.msra.mxu0 %v218
    %308 = vmatprep.subr.bf16.mxu0 0
    %309 = vmatpush1.bf16.msra.mxu0 %v221
    %310 = vmatprep.subr.bf16.mxu0 0
    %311 = vmatpush1.bf16.msra.mxu0 %v224
    %312 = vmatprep.subr.bf16.mxu0 0
    %313 = vmatpush1.bf16.msra.mxu0 %v227
    %314 = vmatprep.subr.bf16.mxu0 0
    %315 = vmatpush1.bf16.msra.mxu0 %v230
    %316 = vmatprep.subr.bf16.mxu0 0
    %317 = vmatpush1.bf16.msra.mxu0 %v233
    %318 = vmatprep.subr.bf16.mxu0 0
    %319 = vmatpush1.bf16.msra.mxu0 %v236
    %320 = vmatprep.subr.bf16.mxu0 0
    %321 = vmatpush1.bf16.msra.mxu0 0
    %322 = vmatprep.subr.bf16.mxu0 0
    %323 = vmatpush1.bf16.msra.mxu0 0
    %324 = vmatprep.subr.bf16.mxu0 0
    %325 = vmatpush1.bf16.msra.mxu0 0
    %326 = vmatprep.subr.bf16.mxu0 0
    %327 = vmatpush1.bf16.msra.mxu0 0
    %328 = vmatprep.subr.bf16.mxu0 0
    %329 = vmatpush1.bf16.msra.mxu0 0
    %330 = vmatprep.subr.bf16.mxu0 0
    %331 = vmatpush1.bf16.msra.mxu0 0
    %332 = vmatprep.subr.bf16.mxu0 0
    %333 = vmatpush1.bf16.msra.mxu0 0
    %334 = vmatprep.subr.bf16.mxu0 0
    %335 = vmatpush1.bf16.msra.mxu0 0
    %336 = vmatprep.mubr.bf16.mxu0 0
    %337 = vmatmul.mubr.bf16.gmra.mrb[0].mxu0 %v83
    %v338 = vpop.f32.mrb[0].mxu0
    %v339 = vadd.f32 %v129, %v338
    %v340 = vpop.f32.mrb[0].mxu0
    %v341 = vpop.f32.mrb[0].mxu0
    %v342 = vadd.f32 %v129, %v341
    %v343 = vpop.f32.mrb[0].mxu0
    %344 = vdwg.mxu0
    %v345 = vmul.f32 %v296, %v296
    %v346 = vmul.f32 %v300, %v300
    %347 = vadd.xlane.f32.xlu0 %v345
    %v348 = vpop.xlane.xlu0 %347
    %349 = vadd.xlane.f32.xlu0 %v346
    %v350 = vpop.xlane.xlu0 %349
    %v351 = vmax.f32 %v348, 1e-24
    %v352 = vmax.f32 %v350, 1e-24
    %v353 = vrsqrt.pop %v351
    %v354 = vrsqrt.pop %v352
    %v355 = vmul.f32 %v296, %v353
    %v356 = vmul.f32 %v300, %v354
    %v357 = vmul.f32 %v355, 0.125
    %v358 = vmul.f32 %v356, 0.125
    %v359 = vmul.f32 %v298, %v298
    %v360 = vmul.f32 %v302, %v302
    %361 = vadd.xlane.f32.xlu0 %v359
    %v362 = vpop.xlane.xlu0 %361
    %363 = vadd.xlane.f32.xlu0 %v360
    %v364 = vpop.xlane.xlu0 %363
    %v365 = vmax.f32 %v362, 1e-24
    %v366 = vmax.f32 %v364, 1e-24
    %v367 = vrsqrt.pop %v365
    %v368 = vrsqrt.pop %v366
    %v369 = vmul.f32 %v298, %v367
    %v370 = vmul.f32 %v302, %v368
    %v371 = vmul.f32 %v339, %v339
    %v372 = vmul.f32 %v342, %v342
    %373 = vadd.xlane.f32.xlu0 %v371
    %v374 = vpop.xlane.xlu0 %373
    %375 = vadd.xlane.f32.xlu0 %v372
    %v376 = vpop.xlane.xlu0 %375
    %v377 = vmax.f32 %v374, 1e-24
    %v378 = vmax.f32 %v376, 1e-24
    %v379 = vrsqrt.pop %v377
    %v380 = vrsqrt.pop %v378
    %v381 = vmul.f32 %v339, %v379
    %v382 = vmul.f32 %v342, %v380
    %v383 = vpack.c.bf16 %v357, %v357
    %v384 = vpack.c.bf16 %v358, %v358
    %v385 = vpack.c.bf16 %v369, %v369
    %v386 = vpack.c.bf16 %v370, %v370
    %v387 = vpack.c.bf16 %v381, %v381
    %v388 = vpack.c.bf16 %v382, %v382
    %389 = vmatprep.subr.bf16.mxu0 0
    %390 = vmatpush1.bf16.xpose.msra.mxu0 %v385
    %391 = vmatprep.subr.bf16.mxu0 0
    %392 = vmatpush1.bf16.xpose.msra.mxu0 0
    %393 = vmatprep.subr.bf16.mxu0 0
    %394 = vmatpush1.bf16.xpose.msra.mxu0 0
    %395 = vmatprep.subr.bf16.mxu0 0
    %396 = vmatpush1.bf16.xpose.msra.mxu0 0
    %397 = vmatprep.subr.bf16.mxu0 0
    %398 = vmatpush1.bf16.xpose.msra.mxu0 0
    %399 = vmatprep.subr.bf16.mxu0 0
    %400 = vmatpush1.bf16.xpose.msra.mxu0 0
    %401 = vmatprep.subr.bf16.mxu0 0
    %402 = vmatpush1.bf16.xpose.msra.mxu0 0
    %403 = vmatprep.subr.bf16.mxu0 0
    %404 = vmatpush1.bf16.xpose.msra.mxu0 0
    %405 = vmatprep.subr.bf16.mxu0 0
    %406 = vmatpush1.bf16.xpose.msra.mxu0 0
    %407 = vmatprep.subr.bf16.mxu0 0
    %408 = vmatpush1.bf16.xpose.msra.mxu0 0
    %409 = vmatprep.subr.bf16.mxu0 0
    %410 = vmatpush1.bf16.xpose.msra.mxu0 0
    %411 = vmatprep.subr.bf16.mxu0 0
    %412 = vmatpush1.bf16.xpose.msra.mxu0 0
    %413 = vmatprep.subr.bf16.mxu0 0
    %414 = vmatpush1.bf16.xpose.msra.mxu0 0
    %415 = vmatprep.subr.bf16.mxu0 0
    %416 = vmatpush1.bf16.xpose.msra.mxu0 0
    %417 = vmatprep.subr.bf16.mxu0 0
    %418 = vmatpush1.bf16.xpose.msra.mxu0 0
    %419 = vmatprep.subr.bf16.mxu0 0
    %420 = vmatpush1.bf16.xpose.msra.mxu0 0
    %421 = vmatprep.mubr.bf16.mxu0 0
    %422 = vmatmul.mubr.bf16.gmra.mrb[0].mxu0 %v383
    %v423 = vpop.f32.mrb[0].mxu0
    %v424 = vadd.f32 0.0, %v423
    %v425 = vpop.f32.mrb[0].mxu0
    %v426 = vpop.f32.mrb[0].mxu0
    %v427 = vpop.f32.mrb[0].mxu0
    %428 = vdwg.mxu0
    %429 = vmatprep.subr.bf16.mxu0 0
    %430 = vmatpush1.bf16.xpose.msra.mxu0 %v386
    %431 = vmatprep.subr.bf16.mxu0 0
    %432 = vmatpush1.bf16.xpose.msra.mxu0 0
    %433 = vmatprep.subr.bf16.mxu0 0
    %434 = vmatpush1.bf16.xpose.msra.mxu0 0
    %435 = vmatprep.subr.bf16.mxu0 0
    %436 = vmatpush1.bf16.xpose.msra.mxu0 0
    %437 = vmatprep.subr.bf16.mxu0 0
    %438 = vmatpush1.bf16.xpose.msra.mxu0 0
    %439 = vmatprep.subr.bf16.mxu0 0
    %440 = vmatpush1.bf16.xpose.msra.mxu0 0
    %441 = vmatprep.subr.bf16.mxu0 0
    %442 = vmatpush1.bf16.xpose.msra.mxu0 0
    %443 = vmatprep.subr.bf16.mxu0 0
    %444 = vmatpush1.bf16.xpose.msra.mxu0 0
    %445 = vmatprep.subr.bf16.mxu0 0
    %446 = vmatpush1.bf16.xpose.msra.mxu0 0
    %447 = vmatprep.subr.bf16.mxu0 0
    %448 = vmatpush1.bf16.xpose.msra.mxu0 0
    %449 = vmatprep.subr.bf16.mxu0 0
    %450 = vmatpush1.bf16.xpose.msra.mxu0 0
    %451 = vmatprep.subr.bf16.mxu0 0
    %452 = vmatpush1.bf16.xpose.msra.mxu0 0
    %453 = vmatprep.subr.bf16.mxu0 0
    %454 = vmatpush1.bf16.xpose.msra.mxu0 0
    %455 = vmatprep.subr.bf16.mxu0 0
    %456 = vmatpush1.bf16.xpose.msra.mxu0 0
    %457 = vmatprep.subr.bf16.mxu0 0
    %458 = vmatpush1.bf16.xpose.msra.mxu0 0
    %459 = vmatprep.subr.bf16.mxu0 0
    %460 = vmatpush1.bf16.xpose.msra.mxu0 0
    %461 = vmatprep.mubr.bf16.mxu0 0
    %462 = vmatmul.mubr.bf16.gmra.mrb[0].mxu0 %v384
    %v463 = vpop.f32.mrb[0].mxu0
    %v464 = vadd.f32 0.0, %v463
    %v465 = vpop.f32.mrb[0].mxu0
    %v466 = vpop.f32.mrb[0].mxu0
    %v467 = vpop.f32.mrb[0].mxu0
    %468 = vdwg.mxu0
    %v469 = vmul.f32 %v424, 1.442695
    %v470 = vpow.pop %v469
    %v471 = vmul.f32 %v464, 1.442695
    %v472 = vpow.pop %v471
    %vm473 = vcmask 64512
    %v474 = vsel %vm473, %v470, 0.0
    %475 = vadd.xlane.f32.xlu0 %v474
    %v476 = vpop.xlane.xlu0 %475
    %v477 = vsel %vm473, %v472, 0.0
    %478 = vadd.xlane.f32.xlu0 %v477
    %v479 = vpop.xlane.xlu0 %478
    %v480 = vrcp.pop %v476
    %v481 = vrcp.pop %v479
    %v482 = vmul.f32 %v470, %v480
    %v483 = vmul.f32 %v472, %v481
    %v484 = vpack.c.bf16 %v482, %v482
    %v485 = vpack.c.bf16 %v483, %v483
    %v487 = vsel %vm473, %v484, 0
    %vm489 = vcmask 1043456
    %v491 = vsel %vm489, %v387, 0
    %493 = vmatprep.subr.bf16.mxu0 0
    %494 = vmatpush1.bf16.msra.mxu0 %v491
    %495 = vmatprep.subr.bf16.mxu0 0
    %496 = vmatpush1.bf16.msra.mxu0 0
    %497 = vmatprep.subr.bf16.mxu0 0
    %498 = vmatpush1.bf16.msra.mxu0 0
    %499 = vmatprep.subr.bf16.mxu0 0
    %500 = vmatpush1.bf16.msra.mxu0 0
    %501 = vmatprep.subr.bf16.mxu0 0
    %502 = vmatpush1.bf16.msra.mxu0 0
    %503 = vmatprep.subr.bf16.mxu0 0
    %504 = vmatpush1.bf16.msra.mxu0 0
    %505 = vmatprep.subr.bf16.mxu0 0
    %506 = vmatpush1.bf16.msra.mxu0 0
    %507 = vmatprep.subr.bf16.mxu0 0
    %508 = vmatpush1.bf16.msra.mxu0 0
    %509 = vmatprep.subr.bf16.mxu0 0
    %510 = vmatpush1.bf16.msra.mxu0 0
    %511 = vmatprep.subr.bf16.mxu0 0
    %512 = vmatpush1.bf16.msra.mxu0 0
    %513 = vmatprep.subr.bf16.mxu0 0
    %514 = vmatpush1.bf16.msra.mxu0 0
    %515 = vmatprep.subr.bf16.mxu0 0
    %516 = vmatpush1.bf16.msra.mxu0 0
    %517 = vmatprep.subr.bf16.mxu0 0
    %518 = vmatpush1.bf16.msra.mxu0 0
    %519 = vmatprep.subr.bf16.mxu0 0
    %520 = vmatpush1.bf16.msra.mxu0 0
    %521 = vmatprep.subr.bf16.mxu0 0
    %522 = vmatpush1.bf16.msra.mxu0 0
    %523 = vmatprep.subr.bf16.mxu0 0
    %524 = vmatpush1.bf16.msra.mxu0 0
    %525 = vmatprep.mubr.bf16.mxu0 0
    %526 = vmatmul.mubr.bf16.gmra.mrb[0].mxu0 %v487
    %v527 = vpop.f32.mrb[0].mxu0
    %v528 = vadd.f32 0.0, %v527
    %v529 = vpop.f32.mrb[0].mxu0
    %v530 = vpop.f32.mrb[0].mxu0
    %v531 = vpop.f32.mrb[0].mxu0
    %532 = vdwg.mxu0
    %v534 = vsel %vm473, %v485, 0
    %v537 = vsel %vm489, %v388, 0
    %539 = vmatprep.subr.bf16.mxu0 0
    %540 = vmatpush1.bf16.msra.mxu0 %v537
    %541 = vmatprep.subr.bf16.mxu0 0
    %542 = vmatpush1.bf16.msra.mxu0 0
    %543 = vmatprep.subr.bf16.mxu0 0
    %544 = vmatpush1.bf16.msra.mxu0 0
    %545 = vmatprep.subr.bf16.mxu0 0
    %546 = vmatpush1.bf16.msra.mxu0 0
    %547 = vmatprep.subr.bf16.mxu0 0
    %548 = vmatpush1.bf16.msra.mxu0 0
    %549 = vmatprep.subr.bf16.mxu0 0
    %550 = vmatpush1.bf16.msra.mxu0 0
    %551 = vmatprep.subr.bf16.mxu0 0
    %552 = vmatpush1.bf16.msra.mxu0 0
    %553 = vmatprep.subr.bf16.mxu0 0
    %554 = vmatpush1.bf16.msra.mxu0 0
    %555 = vmatprep.subr.bf16.mxu0 0
    %556 = vmatpush1.bf16.msra.mxu0 0
    %557 = vmatprep.subr.bf16.mxu0 0
    %558 = vmatpush1.bf16.msra.mxu0 0
    %559 = vmatprep.subr.bf16.mxu0 0
    %560 = vmatpush1.bf16.msra.mxu0 0
    %561 = vmatprep.subr.bf16.mxu0 0
    %562 = vmatpush1.bf16.msra.mxu0 0
    %563 = vmatprep.subr.bf16.mxu0 0
    %564 = vmatpush1.bf16.msra.mxu0 0
    %565 = vmatprep.subr.bf16.mxu0 0
    %566 = vmatpush1.bf16.msra.mxu0 0
    %567 = vmatprep.subr.bf16.mxu0 0
    %568 = vmatpush1.bf16.msra.mxu0 0
    %569 = vmatprep.subr.bf16.mxu0 0
    %570 = vmatpush1.bf16.msra.mxu0 0
    %571 = vmatprep.mubr.bf16.mxu0 0
    %572 = vmatmul.mubr.bf16.gmra.mrb[0].mxu0 %v534
    %v573 = vpop.f32.mrb[0].mxu0
    %v574 = vadd.f32 0.0, %v573
    %v575 = vpop.f32.mrb[0].mxu0
    %v576 = vpop.f32.mrb[0].mxu0
    %v577 = vpop.f32.mrb[0].mxu0
    %578 = vdwg.mxu0
    %v579 = vpack.c.bf16 %v574, %v528
    %v580 = vld [vmem:[#allocation8] sm:$0xf]
    %v581 = vld [vmem:[#allocation8 + $0x4] sm:$0xf]
    %v582 = vld [vmem:[#allocation8 + $0x8] sm:$0xf]
    %v583 = vld [vmem:[#allocation8 + $0xc] sm:$0xf]
    %v584 = vld [vmem:[#allocation8 + $0x10] sm:$0xf]
    %v585 = vld [vmem:[#allocation8 + $0x14] sm:$0xf]
    %v586 = vld [vmem:[#allocation8 + $0x18] sm:$0xf]
    %v587 = vld [vmem:[#allocation8 + $0x1c] sm:$0xf]
    %v588 = vld [vmem:[#allocation8 + $0x20] sm:$0xf]
    %v589 = vld [vmem:[#allocation8 + $0x24] sm:$0xf]
    %v590 = vld [vmem:[#allocation8 + $0x28] sm:$0xf]
    %v591 = vld [vmem:[#allocation8 + $0x2c] sm:$0xf]
    %v592 = vld [vmem:[#allocation8 + $0x30] sm:$0xf]
    %v593 = vld [vmem:[#allocation8 + $0x34] sm:$0xf]
    %v594 = vld [vmem:[#allocation8 + $0x38] sm:$0xf]
    %v595 = vld [vmem:[#allocation8 + $0x3c] sm:$0xf]
    %v596 = vld [vmem:[%s5] sm:$0x1]
    %v598 = vlaneseq
    %v599 = vshrl.u32 %v598, 7
    %v600 = vsub.s32 0, %v599
    %v601 = vrot.slane %v596, %v600
    %v619 = vunpack.c.l.b16 %v580
    %v620 = vunpack.c.l.b16 %v581
    %v621 = vunpack.c.l.b16 %v582
    %v622 = vunpack.c.l.b16 %v583
    %v623 = vunpack.c.l.b16 %v584
    %v624 = vunpack.c.l.b16 %v585
    %v625 = vunpack.c.l.b16 %v586
    %v626 = vunpack.c.l.b16 %v587
    %v627 = vunpack.c.l.b16 %v588
    %v628 = vunpack.c.l.b16 %v589
    %v629 = vunpack.c.l.b16 %v590
    %v630 = vunpack.c.l.b16 %v591
    %v631 = vunpack.c.l.b16 %v592
    %v632 = vunpack.c.l.b16 %v593
    %v633 = vunpack.c.l.b16 %v594
    %v634 = vunpack.c.l.b16 %v595
    %v635 = vpack.c.b16 %v620, %v619
    %v636 = vpack.c.b16 %v622, %v621
    %v637 = vpack.c.b16 %v624, %v623
    %v638 = vpack.c.b16 %v626, %v625
    %v639 = vpack.c.b16 %v628, %v627
    %v640 = vpack.c.b16 %v630, %v629
    %v641 = vpack.c.b16 %v632, %v631
    %v642 = vpack.c.b16 %v634, %v633
    %651 = vmatprep.subr.bf16.mxu0 0
    %652 = vmatpush1.bf16.msra.mxu0 %v635
    %653 = vmatprep.subr.bf16.mxu0 0
    %654 = vmatpush1.bf16.msra.mxu0 %v636
    %655 = vmatprep.subr.bf16.mxu0 0
    %656 = vmatpush1.bf16.msra.mxu0 %v637
    %657 = vmatprep.subr.bf16.mxu0 0
    %658 = vmatpush1.bf16.msra.mxu0 %v638
    %659 = vmatprep.subr.bf16.mxu0 0
    %660 = vmatpush1.bf16.msra.mxu0 %v639
    %661 = vmatprep.subr.bf16.mxu0 0
    %662 = vmatpush1.bf16.msra.mxu0 %v640
    %663 = vmatprep.subr.bf16.mxu0 0
    %664 = vmatpush1.bf16.msra.mxu0 %v641
    %665 = vmatprep.subr.bf16.mxu0 0
    %666 = vmatpush1.bf16.msra.mxu0 %v642
    %667 = vmatprep.subr.bf16.mxu0 0
    %668 = vmatpush1.bf16.msra.mxu0 0
    %669 = vmatprep.subr.bf16.mxu0 0
    %670 = vmatpush1.bf16.msra.mxu0 0
    %671 = vmatprep.subr.bf16.mxu0 0
    %672 = vmatpush1.bf16.msra.mxu0 0
    %673 = vmatprep.subr.bf16.mxu0 0
    %674 = vmatpush1.bf16.msra.mxu0 0
    %675 = vmatprep.subr.bf16.mxu0 0
    %676 = vmatpush1.bf16.msra.mxu0 0
    %677 = vmatprep.subr.bf16.mxu0 0
    %678 = vmatpush1.bf16.msra.mxu0 0
    %679 = vmatprep.subr.bf16.mxu0 0
    %680 = vmatpush1.bf16.msra.mxu0 0
    %681 = vmatprep.subr.bf16.mxu0 0
    %682 = vmatpush1.bf16.msra.mxu0 0
    %683 = vmatprep.mubr.bf16.mxu0 0
    %684 = vmatmul.mubr.bf16.gmra.mrb[0].mxu0 %v579
    %v685 = vpop.f32.mrb[0].mxu0
    %v686 = vadd.f32 %v601, %v685
    %v687 = vpop.f32.mrb[0].mxu0
    %v688 = vpop.f32.mrb[0].mxu0
    %v689 = vadd.f32 %v601, %v688
    %v690 = vpop.f32.mrb[0].mxu0
    %691 = vdwg.mxu0
    %v692 = vadd.f32 %v686, %v81
    %v693 = vadd.f32 %v689, %v82
    %694 = vst [vmem:[#allocation10] sm:$0xff] %v692
    %695 = vst [vmem:[#allocation10 + $0x8] sm:$0xff] %v693
    // Predicated region
    $region42: #{tpu_custom_call.1} parent=1 // pred_check
      _
    $region43: #{tpu_custom_call.1} parent=1 // pred_check_branch
      %697 = sbr.rel (0) target = $region45
    $region44: #{tpu_custom_call.1} parent=1 // pred_region
      %s699 = ssub.s32 256, 256
      %700 = vsyncadd [#allocation4], %s699
      %s701 = sshll.u32 [#allocation10], 4
      %s702 = int_to_ptr.vmem [resolvable:$true] %s701
      %707 = dma.vmem_to_hbm [thread:$0]  %s702, 256, %s6, [#allocation4], 128, 128, 8
    $region45: #{tpu_custom_call.1} parent=1 // pred_fallthru
      _
    // Predicated region
    $region46: #{tpu_custom_call.1} parent=1 // pred_check
      _
    $region47: #{tpu_custom_call.1} parent=1 // pred_check_branch
      %709 = sbr.rel (0) target = $region49
    $region48: #{tpu_custom_call.1} parent=1 // pred_region
      %710 = dma.done [#allocation4], 256
    $region49: #{tpu_custom_call.1} parent=1 // pred_fallthru
      _
    %711 = vsyncpa [#allocation3], 1
    %712 = vsyncpa [#allocation6], 1
    %713 = vsyncpa [#allocation9], 1
    %714 = vsyncpa [#allocation4], 1

</llo_original>
